<compile_context>
chip_gen: v7x
topology: tpu7x:2x2x1
jax: 0.10.0
libtpu: 0.0.40
codegen_flags: <defaults>
</compile_context>

<pallas_src>
from functools import partial

import jax
import jax.numpy as jnp
from jax.experimental import pallas as pl
from jax.experimental.pallas import tpu as pltpu

LANE = 128          # lane width: feature dims padded to a multiple of this
SUBLANE_BF16 = 16   # bf16 packs 2 rows/sublane -> batch tiles aligned to 16


def _round_up(x, m):
    return ((x + m - 1) // m) * m


def _pad2(a, target_shape):
    pads = [(0, t - s) for s, t in zip(a.shape, target_shape)]
    if all(p == (0, 0) for p in pads):
        return a  # already aligned: no copy
    return jnp.pad(a, pads)


# ---------------- Pallas kernel ----------------

def _mlp_fused_kernel(n_layers, x_ref, *refs):
    """refs = [w_i, shift_i] * n_layers + [w_out, b_out] + [o_ref].

    x_ref is f32 (cast to bf16 inside the kernel); weights are bf16 with the
    eval-mode BN scale pre-folded; shifts / output bias / output are f32.
    """
    o_ref = refs[-1]
    h = x_ref[...].astype(jnp.bfloat16)  # VPU cast, hidden under the 1st matmul
    idx = 0
    for _ in range(n_layers):
        w = refs[idx]
        shift = refs[idx + 1]
        idx += 2
        # y = (x @ (W*scale)) + (b*scale + shift): f32 accumulation on the MXU.
        y = jnp.dot(h, w[...], preferred_element_type=jnp.float32) + shift[...]
        # LeakyReLU (negative slope 0.01); Dropout is identity in eval mode.
        y = jnp.where(y > 0, y, jnp.float32(0.01) * y)
        h = y.astype(jnp.bfloat16)
    w_out = refs[idx]
    b_out = refs[idx + 1]
    o_ref[...] = (
        jnp.dot(h, w_out[...], preferred_element_type=jnp.float32) + b_out[...]
    )


# ---------------- One-time parameter preparation ----------------

def prepare_mlp_params(params):
    """Fold BN into weights, pad to lane multiples, cast to bf16 — done ONCE."""
    layers = params["layers"]
    n_layers = len(layers)
    in_dim = layers[0]["w"].shape[0]
    hidden = layers[0]["w"].shape[1]
    out_dim = params["out_w"].shape[1]
    for l in layers:
        assert l["w"].shape[1] == hidden, "all hidden layers must share one width"

    in_pad = _round_up(in_dim, LANE)
    hid_pad = _round_up(hidden, LANE)
    out_pad = _round_up(out_dim, LANE)

    weights, shifts = [], []
    prev_pad = in_pad
    for l in layers:
        # Fold eval-mode BN scale into W (f32, before bf16 cast) and the linear
        # bias into the BN shift: (x@W + b)*s + t = x@(W*s) + (b*s + t).
        w_eff = l["w"] * l["scale"][None, :]
        shift_eff = l["b"] * l["scale"] + l["shift"]
        weights.append(_pad2(w_eff, (prev_pad, hid_pad)).astype(jnp.bfloat16))
        shifts.append(
            _pad2(shift_eff.reshape(1, -1), (1, hid_pad)).astype(jnp.float32)
        )
        prev_pad = hid_pad

    w_out = _pad2(params["out_w"], (prev_pad, out_pad)).astype(jnp.bfloat16)
    b_out = _pad2(params["out_b"].reshape(1, -1), (1, out_pad)).astype(jnp.float32)

    return dict(
        n_layers=n_layers,
        in_dim=in_dim,
        out_dim=out_dim,
        in_pad=in_pad,
        hid_pad=hid_pad,
        out_pad=out_pad,
        weights=[jax.device_put(w) for w in weights],
        shifts=[jax.device_put(s) for s in shifts],
        w_out=jax.device_put(w_out),
        b_out=jax.device_put(b_out),
    )


# ---------------- Forward wrapper ----------------

def mlp_forward(prepared, x, *, max_tile_n=512):
    """Single fused pallas_call over pre-padded / pre-folded parameters."""
    batch, in_dim = x.shape
    assert in_dim == prepared["in_dim"]
    n_layers = prepared["n_layers"]
    in_pad = prepared["in_pad"]
    hid_pad = prepared["hid_pad"]
    out_pad = prepared["out_pad"]

    # Batch tiling: 16-aligned for packed bf16 sublanes; cap at ~half the batch
    # (when large enough) so the "parallel" axis has >=2 steps for v7x's 2 TCs.
    batch16 = _round_up(batch, SUBLANE_BF16)
    tile_n = min(max_tile_n, batch16)
    if batch16 >= 2 * SUBLANE_BF16:
        tile_n = min(tile_n, _round_up((batch16 + 1) // 2, SUBLANE_BF16))
    n_pad = _round_up(batch, tile_n)

    # x stays f32 (cast happens inside the kernel); pad is a no-op when aligned.
    x_p = _pad2(x.astype(jnp.float32), (n_pad, in_pad))

    inputs = [x_p]
    for w, s in zip(prepared["weights"], prepared["shifts"]):
        inputs += [w, s]
    inputs += [prepared["w_out"], prepared["b_out"]]

    # VMEM budget: weights (x2 headroom in case single-buffering is unavailable)
    # + double-buffered x/out tiles + f32+bf16 intermediates + fixed headroom.
    weight_bytes = sum(int(a.size) * a.dtype.itemsize for a in inputs[1:])
    io_bytes = 2 * tile_n * (in_pad + out_pad) * 4
    act_bytes = 4 * tile_n * max(in_pad, hid_pad, out_pad) * (4 + 2)
    vmem_limit = 2 * weight_bytes + io_bytes + act_bytes + (4 << 20)
    vmem_limit = int(max(min(vmem_limit, 100 << 20), 32 << 20))

    def build_specs(single_buffer_consts):
        def const_spec(shape):
            # Constant-index blocks: single-buffer to halve weight VMEM residency.
            if single_buffer_consts:
                return pl.BlockSpec(
                    shape, lambda i: (0, 0), pipeline_mode=pl.Buffered(1)
                )
            return pl.BlockSpec(shape, lambda i: (0, 0))

        specs = [pl.BlockSpec((tile_n, in_pad), lambda i: (i, 0))]
        prev_pad = in_pad
        for _ in range(n_layers):
            specs.append(const_spec((prev_pad, hid_pad)))
            specs.append(const_spec((1, hid_pad)))
            prev_pad = hid_pad
        specs.append(const_spec((prev_pad, out_pad)))
        specs.append(const_spec((1, out_pad)))
        return specs

    def run(single_buffer_consts):
        return pl.pallas_call(
            partial(_mlp_fused_kernel, n_layers),
            out_shape=jax.ShapeDtypeStruct((n_pad, out_pad), jnp.float32),
            grid=(n_pad // tile_n,),
            in_specs=build_specs(single_buffer_consts),
            out_specs=pl.BlockSpec((tile_n, out_pad), lambda i: (i, 0)),
            compiler_params=pltpu.CompilerParams(
                dimension_semantics=("parallel",),
                vmem_limit_bytes=vmem_limit,
            ),
        )(*inputs)

    try:
        out_padded = run(True)
    except Exception:
        # Fallback if single-buffered (Buffered(1)) constant inputs are rejected.
        out_padded = run(False)

    return out_padded[:batch, : prepared["out_dim"]]


# ---------------- Parameter init (deterministic, synthetic) ----------------

def init_mlp_params(key, input_dim, hidden_dim, n_layers, output_dim=2):
    params = {"layers": []}
    in_dim = input_dim
    eps = 1e-5
    for _ in range(n_layers):
        key, kw, kb, kg, kbeta, km, kv = jax.random.split(key, 7)
        w = jax.random.normal(kw, (in_dim, hidden_dim), jnp.float32) * 0.1
        b = jax.random.normal(kb, (hidden_dim,), jnp.float32) * 0.1
        gamma = 1.0 + 0.1 * jax.random.normal(kg, (hidden_dim,), jnp.float32)
        beta = 0.1 * jax.random.normal(kbeta, (hidden_dim,), jnp.float32)
        running_mean = 0.1 * jax.random.normal(km, (hidden_dim,), jnp.float32)
        running_var = jnp.abs(
            1.0 + 0.1 * jax.random.normal(kv, (hidden_dim,), jnp.float32)
        )
        # fold eval-mode BatchNorm1d into per-feature affine
        scale = gamma / jnp.sqrt(running_var + eps)
        shift = beta - running_mean * scale
        params["layers"].append(dict(w=w, b=b, scale=scale, shift=shift))
        in_dim = hidden_dim
    key, kw, kb = jax.random.split(key, 3)
    params["out_w"] = jax.random.normal(kw, (in_dim, output_dim), jnp.float32) * 0.1
    params["out_b"] = jax.random.normal(kb, (output_dim,), jnp.float32) * 0.1
    return params


def mlp_forward_ref(params, x):
    # pure-JAX f32 reference for verification
    h = x
    for layer in params["layers"]:
        y = h @ layer["w"] + layer["b"]
        y = y * layer["scale"] + layer["shift"]
        h = jnp.where(y > 0, y, 0.01 * y)
    return h @ params["out_w"] + params["out_b"]


# ---------------- Main ----------------

if __name__ == "__main__":
    key = jax.random.PRNGKey(0)
    batch, input_dim, hidden_dim, n_layers, output_dim = 8, 16, 32, 2, 2

    key, kx = jax.random.split(key)
    x = jax.random.normal(kx, (batch, input_dim), jnp.float32)

    params = init_mlp_params(key, input_dim, hidden_dim, n_layers, output_dim)
    prepared = prepare_mlp_params(params)  # one-time fold/pad/cast, off hot path

    out = mlp_forward(prepared, x)
    out = jax.block_until_ready(out)

    ref = mlp_forward_ref(params, x)
    assert out.shape == (batch, output_dim)
    # bf16 matmul inputs -> loosened tolerance vs. the f32 reference
    assert jnp.allclose(out, ref, atol=2e-2, rtol=2e-2), (
        f"max abs err = {jnp.max(jnp.abs(out - ref))}"
    )

    print("KERNEL_OK")
</pallas_src>

<mosaic_0001>
module attributes {stable_mosaic.version = 11 : i64} {
  func.func @_mlp_fused_kernel(%arg0: i32, %arg1: memref<16x128xf32, #tpu.memory_space<vmem>>, %arg2: memref<128x128xbf16, #tpu.memory_space<vmem>>, %arg3: memref<1x128xf32, #tpu.memory_space<vmem>>, %arg4: memref<128x128xbf16, #tpu.memory_space<vmem>>, %arg5: memref<1x128xf32, #tpu.memory_space<vmem>>, %arg6: memref<128x128xbf16, #tpu.memory_space<vmem>>, %arg7: memref<1x128xf32, #tpu.memory_space<vmem>>, %arg8: memref<16x128xf32, #tpu.memory_space<vmem>>) attributes {dimension_semantics = [#tpu.dimension_semantics<parallel>], iteration_bounds = array<i64: 1>, scalar_prefetch = 0 : i64, scratch_operands = 0 : i64, tpu.core_type = #tpu.core_type<tc>, window_params = [{transform_indices = @transform_0, window_bounds = array<i64: 16, 128>}, {pipeline_mode = #tpu.pipeline_mode<synchronous>, transform_indices = @transform_1, window_bounds = array<i64: 128, 128>}, {pipeline_mode = #tpu.pipeline_mode<synchronous>, transform_indices = @transform_2, window_bounds = array<i64: 1, 128>}, {pipeline_mode = #tpu.pipeline_mode<synchronous>, transform_indices = @transform_3, window_bounds = array<i64: 128, 128>}, {pipeline_mode = #tpu.pipeline_mode<synchronous>, transform_indices = @transform_4, window_bounds = array<i64: 1, 128>}, {pipeline_mode = #tpu.pipeline_mode<synchronous>, transform_indices = @transform_5, window_bounds = array<i64: 128, 128>}, {pipeline_mode = #tpu.pipeline_mode<synchronous>, transform_indices = @transform_6, window_bounds = array<i64: 1, 128>}, {transform_indices = @transform_7, window_bounds = array<i64: 16, 128>}]} {
    %c0 = arith.constant 0 : index
    %c0_0 = arith.constant 0 : index
    %0 = vector.load %arg1[%c0, %c0_0] : memref<16x128xf32, #tpu.memory_space<vmem>>, vector<16x128xf32>
    %1 = arith.truncf %0 : vector<16x128xf32> to vector<16x128xbf16>
    %c0_1 = arith.constant 0 : index
    %c0_2 = arith.constant 0 : index
    %2 = vector.load %arg2[%c0_1, %c0_2] : memref<128x128xbf16, #tpu.memory_space<vmem>>, vector<128x128xbf16>
    %cst = arith.constant dense<0.000000e+00> : vector<16x128xf32>
    %3 = tpu.matmul %1, %2, %cst {dimension_numbers = #tpu.dot_dimension_numbers<[1], [0], [0], [1], [0, 0, 1, 1], [], []>} : vector<16x128xbf16>, vector<128x128xbf16>, vector<16x128xf32> -> vector<16x128xf32>
    %c0_3 = arith.constant 0 : index
    %c0_4 = arith.constant 0 : index
    %4 = vector.load %arg3[%c0_3, %c0_4] : memref<1x128xf32, #tpu.memory_space<vmem>>, vector<1x128xf32>
    %5 = vector.broadcast %4 : vector<1x128xf32> to vector<16x128xf32>
    %6 = arith.addf %3, %5 : vector<16x128xf32>
    %cst_5 = arith.constant 0.000000e+00 : f32
    %7 = vector.broadcast %cst_5 : f32 to vector<16x128xf32>
    %8 = arith.cmpf ogt, %6, %7 : vector<16x128xf32>
    %cst_6 = arith.constant 0.00999999977 : f32
    %9 = vector.broadcast %cst_6 : f32 to vector<16x128xf32>
    %10 = arith.mulf %9, %6 : vector<16x128xf32>
    %11 = arith.select %8, %6, %10 : vector<16x128xi1>, vector<16x128xf32>
    %12 = arith.truncf %11 : vector<16x128xf32> to vector<16x128xbf16>
    %c0_7 = arith.constant 0 : index
    %c0_8 = arith.constant 0 : index
    %13 = vector.load %arg4[%c0_7, %c0_8] : memref<128x128xbf16, #tpu.memory_space<vmem>>, vector<128x128xbf16>
    %cst_9 = arith.constant dense<0.000000e+00> : vector<16x128xf32>
    %14 = tpu.matmul %12, %13, %cst_9 {dimension_numbers = #tpu.dot_dimension_numbers<[1], [0], [0], [1], [0, 0, 1, 1], [], []>} : vector<16x128xbf16>, vector<128x128xbf16>, vector<16x128xf32> -> vector<16x128xf32>
    %c0_10 = arith.constant 0 : index
    %c0_11 = arith.constant 0 : index
    %15 = vector.load %arg5[%c0_10, %c0_11] : memref<1x128xf32, #tpu.memory_space<vmem>>, vector<1x128xf32>
    %16 = vector.broadcast %15 : vector<1x128xf32> to vector<16x128xf32>
    %17 = arith.addf %14, %16 : vector<16x128xf32>
    %cst_12 = arith.constant 0.000000e+00 : f32
    %18 = vector.broadcast %cst_12 : f32 to vector<16x128xf32>
    %19 = arith.cmpf ogt, %17, %18 : vector<16x128xf32>
    %cst_13 = arith.constant 0.00999999977 : f32
    %20 = vector.broadcast %cst_13 : f32 to vector<16x128xf32>
    %21 = arith.mulf %20, %17 : vector<16x128xf32>
    %22 = arith.select %19, %17, %21 : vector<16x128xi1>, vector<16x128xf32>
    %23 = arith.truncf %22 : vector<16x128xf32> to vector<16x128xbf16>
    %c0_14 = arith.constant 0 : index
    %c0_15 = arith.constant 0 : index
    %24 = vector.load %arg6[%c0_14, %c0_15] : memref<128x128xbf16, #tpu.memory_space<vmem>>, vector<128x128xbf16>
    %cst_16 = arith.constant dense<0.000000e+00> : vector<16x128xf32>
    %25 = tpu.matmul %23, %24, %cst_16 {dimension_numbers = #tpu.dot_dimension_numbers<[1], [0], [0], [1], [0, 0, 1, 1], [], []>} : vector<16x128xbf16>, vector<128x128xbf16>, vector<16x128xf32> -> vector<16x128xf32>
    %c0_17 = arith.constant 0 : index
    %c0_18 = arith.constant 0 : index
    %26 = vector.load %arg7[%c0_17, %c0_18] : memref<1x128xf32, #tpu.memory_space<vmem>>, vector<1x128xf32>
    %27 = vector.broadcast %26 : vector<1x128xf32> to vector<16x128xf32>
    %28 = arith.addf %25, %27 : vector<16x128xf32>
    %c0_19 = arith.constant 0 : index
    %c0_20 = arith.constant 0 : index
    %29 = vector.load %arg8[%c0_19, %c0_20] : memref<16x128xf32, #tpu.memory_space<vmem>>, vector<16x128xf32>
    tpu.vector_store %arg8[%c0_19, %c0_20], %28 {strides = array<i32>} : memref<16x128xf32, #tpu.memory_space<vmem>>, vector<16x128xf32>,
    return
  }
  func.func @transform_0(%arg0: i32) -> (i32, i32) {
    %c0_i32 = arith.constant 0 : i32
    %c0_i32_0 = arith.constant 0 : i32
    return %arg0, %c0_i32 : i32, i32
  }
  func.func @transform_1(%arg0: i32) -> (i32, i32) {
    %c0_i32 = arith.constant 0 : i32
    %c0_i32_0 = arith.constant 0 : i32
    %c0_i32_1 = arith.constant 0 : i32
    return %c0_i32, %c0_i32_0 : i32, i32
  }
  func.func @transform_2(%arg0: i32) -> (i32, i32) {
    %c0_i32 = arith.constant 0 : i32
    %c0_i32_0 = arith.constant 0 : i32
    %c0_i32_1 = arith.constant 0 : i32
    return %c0_i32, %c0_i32_0 : i32, i32
  }
  func.func @transform_3(%arg0: i32) -> (i32, i32) {
    %c0_i32 = arith.constant 0 : i32
    %c0_i32_0 = arith.constant 0 : i32
    %c0_i32_1 = arith.constant 0 : i32
    return %c0_i32, %c0_i32_0 : i32, i32
  }
  func.func @transform_4(%arg0: i32) -> (i32, i32) {
    %c0_i32 = arith.constant 0 : i32
    %c0_i32_0 = arith.constant 0 : i32
    %c0_i32_1 = arith.constant 0 : i32
    return %c0_i32, %c0_i32_0 : i32, i32
  }
  func.func @transform_5(%arg0: i32) -> (i32, i32) {
    %c0_i32 = arith.constant 0 : i32
    %c0_i32_0 = arith.constant 0 : i32
    %c0_i32_1 = arith.constant 0 : i32
    return %c0_i32, %c0_i32_0 : i32, i32
  }
  func.func @transform_6(%arg0: i32) -> (i32, i32) {
    %c0_i32 = arith.constant 0 : i32
    %c0_i32_0 = arith.constant 0 : i32
    %c0_i32_1 = arith.constant 0 : i32
    return %c0_i32, %c0_i32_0 : i32, i32
  }
  func.func @transform_7(%arg0: i32) -> (i32, i32) {
    %c0_i32 = arith.constant 0 : i32
    %c0_i32_0 = arith.constant 0 : i32
    return %arg0, %c0_i32 : i32, i32
  }
}

module attributes {stable_mosaic.version = 11 : i64} {
  func.func @_mlp_fused_kernel(%arg0: i32, %arg1: memref<16x128xf32, #tpu.memory_space<vmem>>, %arg2: memref<128x128xbf16, #tpu.memory_space<vmem>>, %arg3: memref<1x128xf32, #tpu.memory_space<vmem>>, %arg4: memref<128x128xbf16, #tpu.memory_space<vmem>>, %arg5: memref<1x128xf32, #tpu.memory_space<vmem>>, %arg6: memref<128x128xbf16, #tpu.memory_space<vmem>>, %arg7: memref<1x128xf32, #tpu.memory_space<vmem>>, %arg8: memref<16x128xf32, #tpu.memory_space<vmem>>) attributes {dimension_semantics = [#tpu.dimension_semantics<parallel>], iteration_bounds = array<i64: 1>, scalar_prefetch = 0 : i64, scratch_operands = 0 : i64, tpu.core_type = #tpu.core_type<tc>, window_params = [{transform_indices = @transform_0, window_bounds = array<i64: 16, 128>}, {pipeline_mode = #tpu.pipeline_mode<synchronous>, transform_indices = @transform_1, window_bounds = array<i64: 128, 128>}, {pipeline_mode = #tpu.pipeline_mode<synchronous>, transform_indices = @transform_2, window_bounds = array<i64: 1, 128>}, {pipeline_mode = #tpu.pipeline_mode<synchronous>, transform_indices = @transform_3, window_bounds = array<i64: 128, 128>}, {pipeline_mode = #tpu.pipeline_mode<synchronous>, transform_indices = @transform_4, window_bounds = array<i64: 1, 128>}, {pipeline_mode = #tpu.pipeline_mode<synchronous>, transform_indices = @transform_5, window_bounds = array<i64: 128, 128>}, {pipeline_mode = #tpu.pipeline_mode<synchronous>, transform_indices = @transform_6, window_bounds = array<i64: 1, 128>}, {transform_indices = @transform_7, window_bounds = array<i64: 16, 128>}]} {
    %c0 = arith.constant 0 : index
    %c0_0 = arith.constant 0 : index
    %0 = vector.load %arg1[%c0, %c0_0] : memref<16x128xf32, #tpu.memory_space<vmem>>, vector<16x128xf32>
    %1 = arith.truncf %0 : vector<16x128xf32> to vector<16x128xbf16>
    %c0_1 = arith.constant 0 : index
    %c0_2 = arith.constant 0 : index
    %2 = vector.load %arg2[%c0_1, %c0_2] : memref<128x128xbf16, #tpu.memory_space<vmem>>, vector<128x128xbf16>
    %cst = arith.constant dense<0.000000e+00> : vector<16x128xf32>
    %3 = tpu.matmul %1, %2, %cst {dimension_numbers = #tpu.dot_dimension_numbers<[1], [0], [0], [1], [0, 0, 1, 1], [], []>} : vector<16x128xbf16>, vector<128x128xbf16>, vector<16x128xf32> -> vector<16x128xf32>
    %c0_3 = arith.constant 0 : index
    %c0_4 = arith.constant 0 : index
    %4 = vector.load %arg3[%c0_3, %c0_4] : memref<1x128xf32, #tpu.memory_space<vmem>>, vector<1x128xf32>
    %5 = vector.broadcast %4 : vector<1x128xf32> to vector<16x128xf32>
    %6 = arith.addf %3, %5 : vector<16x128xf32>
    %cst_5 = arith.constant 0.000000e+00 : f32
    %7 = vector.broadcast %cst_5 : f32 to vector<16x128xf32>
    %8 = arith.cmpf ogt, %6, %7 : vector<16x128xf32>
    %cst_6 = arith.constant 0.00999999977 : f32
    %9 = vector.broadcast %cst_6 : f32 to vector<16x128xf32>
    %10 = arith.mulf %9, %6 : vector<16x128xf32>
    %11 = arith.select %8, %6, %10 : vector<16x128xi1>, vector<16x128xf32>
    %12 = arith.truncf %11 : vector<16x128xf32> to vector<16x128xbf16>
    %c0_7 = arith.constant 0 : index
    %c0_8 = arith.constant 0 : index
    %13 = vector.load %arg4[%c0_7, %c0_8] : memref<128x128xbf16, #tpu.memory_space<vmem>>, vector<128x128xbf16>
    %cst_9 = arith.constant dense<0.000000e+00> : vector<16x128xf32>
    %14 = tpu.matmul %12, %13, %cst_9 {dimension_numbers = #tpu.dot_dimension_numbers<[1], [0], [0], [1], [0, 0, 1, 1], [], []>} : vector<16x128xbf16>, vector<128x128xbf16>, vector<16x128xf32> -> vector<16x128xf32>
    %c0_10 = arith.constant 0 : index
    %c0_11 = arith.constant 0 : index
    %15 = vector.load %arg5[%c0_10, %c0_11] : memref<1x128xf32, #tpu.memory_space<vmem>>, vector<1x128xf32>
    %16 = vector.broadcast %15 : vector<1x128xf32> to vector<16x128xf32>
    %17 = arith.addf %14, %16 : vector<16x128xf32>
    %cst_12 = arith.constant 0.000000e+00 : f32
    %18 = vector.broadcast %cst_12 : f32 to vector<16x128xf32>
    %19 = arith.cmpf ogt, %17, %18 : vector<16x128xf32>
    %cst_13 = arith.constant 0.00999999977 : f32
    %20 = vector.broadcast %cst_13 : f32 to vector<16x128xf32>
    %21 = arith.mulf %20, %17 : vector<16x128xf32>
    %22 = arith.select %19, %17, %21 : vector<16x128xi1>, vector<16x128xf32>
    %23 = arith.truncf %22 : vector<16x128xf32> to vector<16x128xbf16>
    %c0_14 = arith.constant 0 : index
    %c0_15 = arith.constant 0 : index
    %24 = vector.load %arg6[%c0_14, %c0_15] : memref<128x128xbf16, #tpu.memory_space<vmem>>, vector<128x128xbf16>
    %cst_16 = arith.constant dense<0.000000e+00> : vector<16x128xf32>
    %25 = tpu.matmul %23, %24, %cst_16 {dimension_numbers = #tpu.dot_dimension_numbers<[1], [0], [0], [1], [0, 0, 1, 1], [], []>} : vector<16x128xbf16>, vector<128x128xbf16>, vector<16x128xf32> -> vector<16x128xf32>
    %c0_17 = arith.constant 0 : index
    %c0_18 = arith.constant 0 : index
    %26 = vector.load %arg7[%c0_17, %c0_18] : memref<1x128xf32, #tpu.memory_space<vmem>>, vector<1x128xf32>
    %27 = vector.broadcast %26 : vector<1x128xf32> to vector<16x128xf32>
    %28 = arith.addf %25, %27 : vector<16x128xf32>
    %c0_19 = arith.constant 0 : index
    %c0_20 = arith.constant 0 : index
    %29 = vector.load %arg8[%c0_19, %c0_20] : memref<16x128xf32, #tpu.memory_space<vmem>>, vector<16x128xf32>
    tpu.vector_store %arg8[%c0_19, %c0_20], %28 {strides = array<i32>} : memref<16x128xf32, #tpu.memory_space<vmem>>, vector<16x128xf32>,
    return
  }
  func.func @transform_0(%arg0: i32) -> (i32, i32) {
    %c0_i32 = arith.constant 0 : i32
    %c0_i32_0 = arith.constant 0 : i32
    return %arg0, %c0_i32 : i32, i32
  }
  func.func @transform_1(%arg0: i32) -> (i32, i32) {
    %c0_i32 = arith.constant 0 : i32
    %c0_i32_0 = arith.constant 0 : i32
    %c0_i32_1 = arith.constant 0 : i32
    return %c0_i32, %c0_i32_0 : i32, i32
  }
  func.func @transform_2(%arg0: i32) -> (i32, i32) {
    %c0_i32 = arith.constant 0 : i32
    %c0_i32_0 = arith.constant 0 : i32
    %c0_i32_1 = arith.constant 0 : i32
    return %c0_i32, %c0_i32_0 : i32, i32
  }
  func.func @transform_3(%arg0: i32) -> (i32, i32) {
    %c0_i32 = arith.constant 0 : i32
    %c0_i32_0 = arith.constant 0 : i32
    %c0_i32_1 = arith.constant 0 : i32
    return %c0_i32, %c0_i32_0 : i32, i32
  }
  func.func @transform_4(%arg0: i32) -> (i32, i32) {
    %c0_i32 = arith.constant 0 : i32
    %c0_i32_0 = arith.constant 0 : i32
    %c0_i32_1 = arith.constant 0 : i32
    return %c0_i32, %c0_i32_0 : i32, i32
  }
  func.func @transform_5(%arg0: i32) -> (i32, i32) {
    %c0_i32 = arith.constant 0 : i32
    %c0_i32_0 = arith.constant 0 : i32
    %c0_i32_1 = arith.constant 0 : i32
    return %c0_i32, %c0_i32_0 : i32, i32
  }
  func.func @transform_6(%arg0: i32) -> (i32, i32) {
    %c0_i32 = arith.constant 0 : i32
    %c0_i32_0 = arith.constant 0 : i32
    %c0_i32_1 = arith.constant 0 : i32
    return %c0_i32, %c0_i32_0 : i32, i32
  }
  func.func @transform_7(%arg0: i32) -> (i32, i32) {
    %c0_i32 = arith.constant 0 : i32
    %c0_i32_0 = arith.constant 0 : i32
    return %arg0, %c0_i32 : i32, i32
  }
}

</mosaic_0001>

<llo_original>
// kernel: tpu_custom_call.1
$region0: #{tpu_custom_call.1}
  #allocation0 [shape = 'u32[]', space=smem, size = 0x4, offset = 0x4, fixed_abs, tag = 'smem constant byte address 0x4 - core index']
  #allocation1 [shape = 'u32[144,128]{1,0:T(1,128)}', space=vmem, size = 0x12000, scoped, tag = 'internal scratch']
  %s0 = inlined_call_operand.hbm [shape: f32[16,128], index: 0, kind: input, shape index: {}]
  %s1 = inlined_call_operand.hbm [shape: bf16[128,128], index: 1, kind: input, shape index: {}]
  %s2 = inlined_call_operand.vmem [shape: f32[1,128], index: 2, kind: input, shape index: {}]
  %s3 = inlined_call_operand.hbm [shape: bf16[128,128], index: 3, kind: input, shape index: {}]
  %s4 = inlined_call_operand.vmem [shape: f32[1,128], index: 4, kind: input, shape index: {}]
  %s5 = inlined_call_operand.hbm [shape: bf16[128,128], index: 5, kind: input, shape index: {}]
  %s6 = inlined_call_operand.vmem [shape: f32[1,128], index: 6, kind: input, shape index: {}]
  %s7 = inlined_call_operand.hbm [shape: f32[16,128], index: 7, kind: output, shape index: {}]
  %s8 = sld [smem:[#allocation0]]
  $region54: #{tpu_custom_call.1} parent=0
    _
  %s10 = ssub.s32 1, %s8
  %s11 = scalar_select 0, %s10, %s8
  $region1: #{tpu_custom_call.1} parent=0
    #allocation2 [shape = 'u8[8192]{0}', space=vmem, size = 0x2000, scoped, tag = 'input window, operand 0, single buffered']
    #allocation3 [shape = 's32[1]{0}', space=sflag, size = 0x4, scoped, tag = 'scoped memory for tpu_custom_call.1']
    #allocation4 [shape = 's32[1]{0}', space=sflag, size = 0x4, scoped, tag = 'scoped memory for tpu_custom_call.1']
    #allocation5 [shape = 'u8[32768]{0}', space=vmem, size = 0x8000, scoped, tag = 'input window, operand 1, single buffered']
    #allocation6 [shape = 's32[1]{0}', space=sflag, size = 0x4, scoped, tag = 'scoped memory for tpu_custom_call.1']
    #allocation7 [shape = 'u8[32768]{0}', space=vmem, size = 0x8000, scoped, tag = 'input window, operand 3, single buffered']
    #allocation8 [shape = 'u8[32768]{0}', space=vmem, size = 0x8000, scoped, tag = 'input window, operand 5, single buffered']
    #allocation9 [shape = 's32[1]{0}', space=sflag, size = 0x4, scoped, tag = 'scoped memory for tpu_custom_call.1']
    #allocation10 [shape = 'u8[8192]{0}', space=vmem, size = 0x2000, scoped, tag = 'output window, operand 0, single buffered']
    %12 = vsyncpa [#allocation3], 0
    %13 = vsyncpa [#allocation6], 0
    %14 = vsyncpa [#allocation9], 0
    %15 = vsyncpa [#allocation4], 0
    // Predicated region
    $region2: #{tpu_custom_call.1} parent=1 // pred_check
      _
    $region3: #{tpu_custom_call.1} parent=1 // pred_check_branch
      %17 = sbr.rel (0) target = $region5
    $region4: #{tpu_custom_call.1} parent=1 // pred_region
      %s19 = ssub.s32 256, 256
      %20 = vsyncadd [#allocation3], %s19
      %s21 = sshll.u32 [#allocation2], 4
      %s22 = int_to_ptr.vmem [resolvable:$true] %s21
      %27 = dma.hbm_to_vmem [thread:$0]  %s0, 256, %s22, [#allocation3], 128, 128, 8
    $region5: #{tpu_custom_call.1} parent=1 // pred_fallthru
      _
    // Predicated region
    $region6: #{tpu_custom_call.1} parent=1 // pred_check
      _
    $region7: #{tpu_custom_call.1} parent=1 // pred_check_branch
      %29 = sbr.rel (0) target = $region9
    $region8: #{tpu_custom_call.1} parent=1 // pred_region
      %s31 = ssub.s32 1024, 1024
      %32 = vsyncadd [#allocation6], %s31
      %s33 = sshll.u32 [#allocation5], 4
      %s34 = int_to_ptr.vmem [resolvable:$true] %s33
      %39 = dma.hbm_to_vmem [thread:$0]  %s1, 1024, %s34, [#allocation6], 64, 64, 4
    $region9: #{tpu_custom_call.1} parent=1 // pred_fallthru
      _
    // Predicated region
    $region10: #{tpu_custom_call.1} parent=1 // pred_check
      _
    $region11: #{tpu_custom_call.1} parent=1 // pred_check_branch
      %41 = sbr.rel (0) target = $region13
    $region12: #{tpu_custom_call.1} parent=1 // pred_region
      _
    $region13: #{tpu_custom_call.1} parent=1 // pred_fallthru
      _
    // Predicated region
    $region14: #{tpu_custom_call.1} parent=1 // pred_check
      _
    $region15: #{tpu_custom_call.1} parent=1 // pred_check_branch
      %43 = sbr.rel (0) target = $region17
    $region16: #{tpu_custom_call.1} parent=1 // pred_region
      %s45 = ssub.s32 1024, 1024
      %46 = vsyncadd [#allocation6], %s45
      %s47 = sshll.u32 [#allocation7], 4
      %s48 = int_to_ptr.vmem [resolvable:$true] %s47
      %53 = dma.hbm_to_vmem [thread:$0]  %s3, 1024, %s48, [#allocation6], 64, 64, 4
    $region17: #{tpu_custom_call.1} parent=1 // pred_fallthru
      _
    // Predicated region
    $region18: #{tpu_custom_call.1} parent=1 // pred_check
      _
    $region19: #{tpu_custom_call.1} parent=1 // pred_check_branch
      %55 = sbr.rel (0) target = $region21
    $region20: #{tpu_custom_call.1} parent=1 // pred_region
      _
    $region21: #{tpu_custom_call.1} parent=1 // pred_fallthru
      _
    // Predicated region
    $region22: #{tpu_custom_call.1} parent=1 // pred_check
      _
    $region23: #{tpu_custom_call.1} parent=1 // pred_check_branch
      %57 = sbr.rel (0) target = $region25
    $region24: #{tpu_custom_call.1} parent=1 // pred_region
      %s59 = ssub.s32 1024, 1024
      %60 = vsyncadd [#allocation9], %s59
      %s61 = sshll.u32 [#allocation8], 4
      %s62 = int_to_ptr.vmem [resolvable:$true] %s61
      %67 = dma.hbm_to_vmem [thread:$0]  %s5, 1024, %s62, [#allocation9], 64, 64, 4
    $region25: #{tpu_custom_call.1} parent=1 // pred_fallthru
      _
    // Predicated region
    $region26: #{tpu_custom_call.1} parent=1 // pred_check
      _
    $region27: #{tpu_custom_call.1} parent=1 // pred_check_branch
      %69 = sbr.rel (0) target = $region29
    $region28: #{tpu_custom_call.1} parent=1 // pred_region
      _
    $region29: #{tpu_custom_call.1} parent=1 // pred_fallthru
      _
    // Predicated region
    $region30: #{tpu_custom_call.1} parent=1 // pred_check
      _
    $region31: #{tpu_custom_call.1} parent=1 // pred_check_branch
      %71 = sbr.rel (0) target = $region33
    $region32: #{tpu_custom_call.1} parent=1 // pred_region
      %72 = dma.done [#allocation3], 256
    $region33: #{tpu_custom_call.1} parent=1 // pred_fallthru
      _
    // Predicated region
    $region34: #{tpu_custom_call.1} parent=1 // pred_check
      _
    $region35: #{tpu_custom_call.1} parent=1 // pred_check_branch
      %74 = sbr.rel (0) target = $region37
    $region36: #{tpu_custom_call.1} parent=1 // pred_region
      %75 = dma.done [#allocation6], 1024
    $region37: #{tpu_custom_call.1} parent=1 // pred_fallthru
      _
    // Predicated region
    $region38: #{tpu_custom_call.1} parent=1 // pred_check
      _
    $region39: #{tpu_custom_call.1} parent=1 // pred_check_branch
      %77 = sbr.rel (0) target = $region41
    $region40: #{tpu_custom_call.1} parent=1 // pred_region
      %78 = dma.done [#allocation6], 1024
    $region41: #{tpu_custom_call.1} parent=1 // pred_fallthru
      _
    // Predicated region
    $region42: #{tpu_custom_call.1} parent=1 // pred_check
      _
    $region43: #{tpu_custom_call.1} parent=1 // pred_check_branch
      %80 = sbr.rel (0) target = $region45
    $region44: #{tpu_custom_call.1} parent=1 // pred_region
      %81 = dma.done [#allocation9], 1024
    $region45: #{tpu_custom_call.1} parent=1 // pred_fallthru
      _
    %v83 = vld [vmem:[#allocation2] sm:$0xff]
    %v84 = vld [vmem:[#allocation2 + $0x8] sm:$0xff]
    %v85 = vpack.c.bf16 %v84, %v83
    %v86 = vld [vmem:[#allocation5] sm:$0xf]
    %v87 = vld [vmem:[#allocation5 + $0x4] sm:$0xf]
    %v88 = vld [vmem:[#allocation5 + $0x8] sm:$0xf]
    %v89 = vld [vmem:[#allocation5 + $0xc] sm:$0xf]
    %v90 = vld [vmem:[#allocation5 + $0x10] sm:$0xf]
    %v91 = vld [vmem:[#allocation5 + $0x14] sm:$0xf]
    %v92 = vld [vmem:[#allocation5 + $0x18] sm:$0xf]
    %v93 = vld [vmem:[#allocation5 + $0x1c] sm:$0xf]
    %v94 = vld [vmem:[#allocation5 + $0x20] sm:$0xf]
    %v95 = vld [vmem:[#allocation5 + $0x24] sm:$0xf]
    %v96 = vld [vmem:[#allocation5 + $0x28] sm:$0xf]
    %v97 = vld [vmem:[#allocation5 + $0x2c] sm:$0xf]
    %v98 = vld [vmem:[#allocation5 + $0x30] sm:$0xf]
    %v99 = vld [vmem:[#allocation5 + $0x34] sm:$0xf]
    %v100 = vld [vmem:[#allocation5 + $0x38] sm:$0xf]
    %v101 = vld [vmem:[#allocation5 + $0x3c] sm:$0xf]
    %v102 = vld [vmem:[%s2] sm:$0x1]
    %v104 = vlaneseq
    %v105 = vshrl.u32 %v104, 7
    %v106 = vsub.s32 0, %v105
    %v107 = vrot.slane %v102, %v106
    %v125 = vunpack.c.l.b16 %v86
    %v126 = vunpack.c.l.b16 %v87
    %v127 = vunpack.c.l.b16 %v88
    %v128 = vunpack.c.l.b16 %v89
    %v129 = vunpack.c.l.b16 %v90
    %v130 = vunpack.c.l.b16 %v91
    %v131 = vunpack.c.l.b16 %v92
    %v132 = vunpack.c.l.b16 %v93
    %v133 = vunpack.c.l.b16 %v94
    %v134 = vunpack.c.l.b16 %v95
    %v135 = vunpack.c.l.b16 %v96
    %v136 = vunpack.c.l.b16 %v97
    %v137 = vunpack.c.l.b16 %v98
    %v138 = vunpack.c.l.b16 %v99
    %v139 = vunpack.c.l.b16 %v100
    %v140 = vunpack.c.l.b16 %v101
    %v141 = vpack.c.b16 %v126, %v125
    %v142 = vpack.c.b16 %v128, %v127
    %v143 = vpack.c.b16 %v130, %v129
    %v144 = vpack.c.b16 %v132, %v131
    %v145 = vpack.c.b16 %v134, %v133
    %v146 = vpack.c.b16 %v136, %v135
    %v147 = vpack.c.b16 %v138, %v137
    %v148 = vpack.c.b16 %v140, %v139
    %157 = vmatprep.subr.bf16.mxu0 0
    %158 = vmatpush1.bf16.msra.mxu0 %v141
    %159 = vmatprep.subr.bf16.mxu0 0
    %160 = vmatpush1.bf16.msra.mxu0 %v142
    %161 = vmatprep.subr.bf16.mxu0 0
    %162 = vmatpush1.bf16.msra.mxu0 %v143
    %163 = vmatprep.subr.bf16.mxu0 0
    %164 = vmatpush1.bf16.msra.mxu0 %v144
    %165 = vmatprep.subr.bf16.mxu0 0
    %166 = vmatpush1.bf16.msra.mxu0 %v145
    %167 = vmatprep.subr.bf16.mxu0 0
    %168 = vmatpush1.bf16.msra.mxu0 %v146
    %169 = vmatprep.subr.bf16.mxu0 0
    %170 = vmatpush1.bf16.msra.mxu0 %v147
    %171 = vmatprep.subr.bf16.mxu0 0
    %172 = vmatpush1.bf16.msra.mxu0 %v148
    %173 = vmatprep.subr.bf16.mxu0 0
    %174 = vmatpush1.bf16.msra.mxu0 0
    %175 = vmatprep.subr.bf16.mxu0 0
    %176 = vmatpush1.bf16.msra.mxu0 0
    %177 = vmatprep.subr.bf16.mxu0 0
    %178 = vmatpush1.bf16.msra.mxu0 0
    %179 = vmatprep.subr.bf16.mxu0 0
    %180 = vmatpush1.bf16.msra.mxu0 0
    %181 = vmatprep.subr.bf16.mxu0 0
    %182 = vmatpush1.bf16.msra.mxu0 0
    %183 = vmatprep.subr.bf16.mxu0 0
    %184 = vmatpush1.bf16.msra.mxu0 0
    %185 = vmatprep.subr.bf16.mxu0 0
    %186 = vmatpush1.bf16.msra.mxu0 0
    %187 = vmatprep.subr.bf16.mxu0 0
    %188 = vmatpush1.bf16.msra.mxu0 0
    %189 = vmatprep.mubr.bf16.mxu0 0
    %190 = vmatmul.mubr.bf16.gmra.mrb[0].mxu0 %v85
    %v191 = vpop.f32.mrb[0].mxu0
    %v192 = vadd.f32 %v107, %v191
    %v193 = vpop.f32.mrb[0].mxu0
    %v194 = vpop.f32.mrb[0].mxu0
    %v195 = vadd.f32 %v107, %v194
    %v196 = vpop.f32.mrb[0].mxu0
    %197 = vdwg.mxu0
    %vm198 = vcmp.gt.f32.partialorder %v192, 0.0
    %vm199 = vcmp.gt.f32.partialorder %v195, 0.0
    %v200 = vmul.f32 %v192, 0.01
    %v201 = vmul.f32 %v195, 0.01
    %v202 = vsel %vm198, %v192, %v200
    %v203 = vsel %vm199, %v195, %v201
    %v204 = vpack.c.bf16 %v203, %v202
    %v205 = vld [vmem:[#allocation7] sm:$0xf]
    %v206 = vld [vmem:[#allocation7 + $0x4] sm:$0xf]
    %v207 = vld [vmem:[#allocation7 + $0x8] sm:$0xf]
    %v208 = vld [vmem:[#allocation7 + $0xc] sm:$0xf]
    %v209 = vld [vmem:[#allocation7 + $0x10] sm:$0xf]
    %v210 = vld [vmem:[#allocation7 + $0x14] sm:$0xf]
    %v211 = vld [vmem:[#allocation7 + $0x18] sm:$0xf]
    %v212 = vld [vmem:[#allocation7 + $0x1c] sm:$0xf]
    %v213 = vld [vmem:[#allocation7 + $0x20] sm:$0xf]
    %v214 = vld [vmem:[#allocation7 + $0x24] sm:$0xf]
    %v215 = vld [vmem:[#allocation7 + $0x28] sm:$0xf]
    %v216 = vld [vmem:[#allocation7 + $0x2c] sm:$0xf]
    %v217 = vld [vmem:[#allocation7 + $0x30] sm:$0xf]
    %v218 = vld [vmem:[#allocation7 + $0x34] sm:$0xf]
    %v219 = vld [vmem:[#allocation7 + $0x38] sm:$0xf]
    %v220 = vld [vmem:[#allocation7 + $0x3c] sm:$0xf]
    %v221 = vld [vmem:[%s4] sm:$0x1]
    %v223 = vlaneseq
    %v224 = vshrl.u32 %v223, 7
    %v225 = vsub.s32 0, %v224
    %v226 = vrot.slane %v221, %v225
    %v244 = vunpack.c.l.b16 %v205
    %v245 = vunpack.c.l.b16 %v206
    %v246 = vunpack.c.l.b16 %v207
    %v247 = vunpack.c.l.b16 %v208
    %v248 = vunpack.c.l.b16 %v209
    %v249 = vunpack.c.l.b16 %v210
    %v250 = vunpack.c.l.b16 %v211
    %v251 = vunpack.c.l.b16 %v212
    %v252 = vunpack.c.l.b16 %v213
    %v253 = vunpack.c.l.b16 %v214
    %v254 = vunpack.c.l.b16 %v215
    %v255 = vunpack.c.l.b16 %v216
    %v256 = vunpack.c.l.b16 %v217
    %v257 = vunpack.c.l.b16 %v218
    %v258 = vunpack.c.l.b16 %v219
    %v259 = vunpack.c.l.b16 %v220
    %v260 = vpack.c.b16 %v245, %v244
    %v261 = vpack.c.b16 %v247, %v246
    %v262 = vpack.c.b16 %v249, %v248
    %v263 = vpack.c.b16 %v251, %v250
    %v264 = vpack.c.b16 %v253, %v252
    %v265 = vpack.c.b16 %v255, %v254
    %v266 = vpack.c.b16 %v257, %v256
    %v267 = vpack.c.b16 %v259, %v258
    %276 = vmatprep.subr.bf16.mxu0 0
    %277 = vmatpush1.bf16.msra.mxu0 %v260
    %278 = vmatprep.subr.bf16.mxu0 0
    %279 = vmatpush1.bf16.msra.mxu0 %v261
    %280 = vmatprep.subr.bf16.mxu0 0
    %281 = vmatpush1.bf16.msra.mxu0 %v262
    %282 = vmatprep.subr.bf16.mxu0 0
    %283 = vmatpush1.bf16.msra.mxu0 %v263
    %284 = vmatprep.subr.bf16.mxu0 0
    %285 = vmatpush1.bf16.msra.mxu0 %v264
    %286 = vmatprep.subr.bf16.mxu0 0
    %287 = vmatpush1.bf16.msra.mxu0 %v265
    %288 = vmatprep.subr.bf16.mxu0 0
    %289 = vmatpush1.bf16.msra.mxu0 %v266
    %290 = vmatprep.subr.bf16.mxu0 0
    %291 = vmatpush1.bf16.msra.mxu0 %v267
    %292 = vmatprep.subr.bf16.mxu0 0
    %293 = vmatpush1.bf16.msra.mxu0 0
    %294 = vmatprep.subr.bf16.mxu0 0
    %295 = vmatpush1.bf16.msra.mxu0 0
    %296 = vmatprep.subr.bf16.mxu0 0
    %297 = vmatpush1.bf16.msra.mxu0 0
    %298 = vmatprep.subr.bf16.mxu0 0
    %299 = vmatpush1.bf16.msra.mxu0 0
    %300 = vmatprep.subr.bf16.mxu0 0
    %301 = vmatpush1.bf16.msra.mxu0 0
    %302 = vmatprep.subr.bf16.mxu0 0
    %303 = vmatpush1.bf16.msra.mxu0 0
    %304 = vmatprep.subr.bf16.mxu0 0
    %305 = vmatpush1.bf16.msra.mxu0 0
    %306 = vmatprep.subr.bf16.mxu0 0
    %307 = vmatpush1.bf16.msra.mxu0 0
    %308 = vmatprep.mubr.bf16.mxu0 0
    %309 = vmatmul.mubr.bf16.gmra.mrb[0].mxu0 %v204
    %v310 = vpop.f32.mrb[0].mxu0
    %v311 = vadd.f32 %v226, %v310
    %v312 = vpop.f32.mrb[0].mxu0
    %v313 = vpop.f32.mrb[0].mxu0
    %v314 = vadd.f32 %v226, %v313
    %v315 = vpop.f32.mrb[0].mxu0
    %316 = vdwg.mxu0
    %vm317 = vcmp.gt.f32.partialorder %v311, 0.0
    %vm318 = vcmp.gt.f32.partialorder %v314, 0.0
    %v319 = vmul.f32 %v311, 0.01
    %v320 = vmul.f32 %v314, 0.01
    %v321 = vsel %vm317, %v311, %v319
    %v322 = vsel %vm318, %v314, %v320
    %v323 = vpack.c.bf16 %v322, %v321
    %v324 = vld [vmem:[#allocation8] sm:$0xf]
    %v325 = vld [vmem:[#allocation8 + $0x4] sm:$0xf]
    %v326 = vld [vmem:[#allocation8 + $0x8] sm:$0xf]
    %v327 = vld [vmem:[#allocation8 + $0xc] sm:$0xf]
    %v328 = vld [vmem:[#allocation8 + $0x10] sm:$0xf]
    %v329 = vld [vmem:[#allocation8 + $0x14] sm:$0xf]
    %v330 = vld [vmem:[#allocation8 + $0x18] sm:$0xf]
    %v331 = vld [vmem:[#allocation8 + $0x1c] sm:$0xf]
    %v332 = vld [vmem:[#allocation8 + $0x20] sm:$0xf]
    %v333 = vld [vmem:[#allocation8 + $0x24] sm:$0xf]
    %v334 = vld [vmem:[#allocation8 + $0x28] sm:$0xf]
    %v335 = vld [vmem:[#allocation8 + $0x2c] sm:$0xf]
    %v336 = vld [vmem:[#allocation8 + $0x30] sm:$0xf]
    %v337 = vld [vmem:[#allocation8 + $0x34] sm:$0xf]
    %v338 = vld [vmem:[#allocation8 + $0x38] sm:$0xf]
    %v339 = vld [vmem:[#allocation8 + $0x3c] sm:$0xf]
    %v340 = vld [vmem:[%s6] sm:$0x1]
    %v342 = vlaneseq
    %v343 = vshrl.u32 %v342, 7
    %v344 = vsub.s32 0, %v343
    %v345 = vrot.slane %v340, %v344
    %v363 = vunpack.c.l.b16 %v324
    %v364 = vunpack.c.l.b16 %v325
    %v365 = vunpack.c.l.b16 %v326
    %v366 = vunpack.c.l.b16 %v327
    %v367 = vunpack.c.l.b16 %v328
    %v368 = vunpack.c.l.b16 %v329
    %v369 = vunpack.c.l.b16 %v330
    %v370 = vunpack.c.l.b16 %v331
    %v371 = vunpack.c.l.b16 %v332
    %v372 = vunpack.c.l.b16 %v333
    %v373 = vunpack.c.l.b16 %v334
    %v374 = vunpack.c.l.b16 %v335
    %v375 = vunpack.c.l.b16 %v336
    %v376 = vunpack.c.l.b16 %v337
    %v377 = vunpack.c.l.b16 %v338
    %v378 = vunpack.c.l.b16 %v339
    %v379 = vpack.c.b16 %v364, %v363
    %v380 = vpack.c.b16 %v366, %v365
    %v381 = vpack.c.b16 %v368, %v367
    %v382 = vpack.c.b16 %v370, %v369
    %v383 = vpack.c.b16 %v372, %v371
    %v384 = vpack.c.b16 %v374, %v373
    %v385 = vpack.c.b16 %v376, %v375
    %v386 = vpack.c.b16 %v378, %v377
    %395 = vmatprep.subr.bf16.mxu0 0
    %396 = vmatpush1.bf16.msra.mxu0 %v379
    %397 = vmatprep.subr.bf16.mxu0 0
    %398 = vmatpush1.bf16.msra.mxu0 %v380
    %399 = vmatprep.subr.bf16.mxu0 0
    %400 = vmatpush1.bf16.msra.mxu0 %v381
    %401 = vmatprep.subr.bf16.mxu0 0
    %402 = vmatpush1.bf16.msra.mxu0 %v382
    %403 = vmatprep.subr.bf16.mxu0 0
    %404 = vmatpush1.bf16.msra.mxu0 %v383
    %405 = vmatprep.subr.bf16.mxu0 0
    %406 = vmatpush1.bf16.msra.mxu0 %v384
    %407 = vmatprep.subr.bf16.mxu0 0
    %408 = vmatpush1.bf16.msra.mxu0 %v385
    %409 = vmatprep.subr.bf16.mxu0 0
    %410 = vmatpush1.bf16.msra.mxu0 %v386
    %411 = vmatprep.subr.bf16.mxu0 0
    %412 = vmatpush1.bf16.msra.mxu0 0
    %413 = vmatprep.subr.bf16.mxu0 0
    %414 = vmatpush1.bf16.msra.mxu0 0
    %415 = vmatprep.subr.bf16.mxu0 0
    %416 = vmatpush1.bf16.msra.mxu0 0
    %417 = vmatprep.subr.bf16.mxu0 0
    %418 = vmatpush1.bf16.msra.mxu0 0
    %419 = vmatprep.subr.bf16.mxu0 0
    %420 = vmatpush1.bf16.msra.mxu0 0
    %421 = vmatprep.subr.bf16.mxu0 0
    %422 = vmatpush1.bf16.msra.mxu0 0
    %423 = vmatprep.subr.bf16.mxu0 0
    %424 = vmatpush1.bf16.msra.mxu0 0
    %425 = vmatprep.subr.bf16.mxu0 0
    %426 = vmatpush1.bf16.msra.mxu0 0
    %427 = vmatprep.mubr.bf16.mxu0 0
    %428 = vmatmul.mubr.bf16.gmra.mrb[0].mxu0 %v323
    %v429 = vpop.f32.mrb[0].mxu0
    %v430 = vadd.f32 %v345, %v429
    %v431 = vpop.f32.mrb[0].mxu0
    %v432 = vpop.f32.mrb[0].mxu0
    %v433 = vadd.f32 %v345, %v432
    %v434 = vpop.f32.mrb[0].mxu0
    %435 = vdwg.mxu0
    %436 = vst [vmem:[#allocation10] sm:$0xff] %v430
    %437 = vst [vmem:[#allocation10 + $0x8] sm:$0xff] %v433
    // Predicated region
    $region46: #{tpu_custom_call.1} parent=1 // pred_check
      _
    $region47: #{tpu_custom_call.1} parent=1 // pred_check_branch
      %439 = sbr.rel (0) target = $region49
    $region48: #{tpu_custom_call.1} parent=1 // pred_region
      %s441 = ssub.s32 256, 256
      %442 = vsyncadd [#allocation4], %s441
      %s443 = sshll.u32 [#allocation10], 4
      %s444 = int_to_ptr.vmem [resolvable:$true] %s443
      %449 = dma.vmem_to_hbm [thread:$0]  %s444, 256, %s7, [#allocation4], 128, 128, 8
    $region49: #{tpu_custom_call.1} parent=1 // pred_fallthru
      _
    // Predicated region
    $region50: #{tpu_custom_call.1} parent=1 // pred_check
      _
    $region51: #{tpu_custom_call.1} parent=1 // pred_check_branch
      %451 = sbr.rel (0) target = $region53
    $region52: #{tpu_custom_call.1} parent=1 // pred_region
      %452 = dma.done [#allocation4], 256
    $region53: #{tpu_custom_call.1} parent=1 // pred_fallthru
      _
    %453 = vsyncpa [#allocation3], 1
    %454 = vsyncpa [#allocation6], 1
    %455 = vsyncpa [#allocation9], 1
    %456 = vsyncpa [#allocation4], 1

// kernel: tpu_custom_call.1
$region0: #{tpu_custom_call.1}
  #allocation0 [shape = 'u32[]', space=smem, size = 0x4, offset = 0x4, fixed_abs, tag = 'smem constant byte address 0x4 - core index']
  #allocation1 [shape = 'u32[144,128]{1,0:T(1,128)}', space=vmem, size = 0x12000, scoped, tag = 'internal scratch']
  %s0 = inlined_call_operand.hbm [shape: f32[16,128], index: 0, kind: input, shape index: {}]
  %s1 = inlined_call_operand.hbm [shape: bf16[128,128], index: 1, kind: input, shape index: {}]
  %s2 = inlined_call_operand.vmem [shape: f32[1,128], index: 2, kind: input, shape index: {}]
  %s3 = inlined_call_operand.hbm [shape: bf16[128,128], index: 3, kind: input, shape index: {}]
  %s4 = inlined_call_operand.vmem [shape: f32[1,128], index: 4, kind: input, shape index: {}]
  %s5 = inlined_call_operand.hbm [shape: bf16[128,128], index: 5, kind: input, shape index: {}]
  %s6 = inlined_call_operand.vmem [shape: f32[1,128], index: 6, kind: input, shape index: {}]
  %s7 = inlined_call_operand.hbm [shape: f32[16,128], index: 7, kind: output, shape index: {}]
  %s8 = sld [smem:[#allocation0]]
  $region54: #{tpu_custom_call.1} parent=0
    _
  %s10 = ssub.s32 1, %s8
  %s11 = scalar_select 0, %s10, %s8
  $region1: #{tpu_custom_call.1} parent=0
    #allocation2 [shape = 'u8[8192]{0}', space=vmem, size = 0x2000, scoped, tag = 'input window, operand 0, single buffered']
    #allocation3 [shape = 's32[1]{0}', space=sflag, size = 0x4, scoped, tag = 'scoped memory for tpu_custom_call.1']
    #allocation4 [shape = 's32[1]{0}', space=sflag, size = 0x4, scoped, tag = 'scoped memory for tpu_custom_call.1']
    #allocation5 [shape = 'u8[32768]{0}', space=vmem, size = 0x8000, scoped, tag = 'input window, operand 1, single buffered']
    #allocation6 [shape = 's32[1]{0}', space=sflag, size = 0x4, scoped, tag = 'scoped memory for tpu_custom_call.1']
    #allocation7 [shape = 'u8[32768]{0}', space=vmem, size = 0x8000, scoped, tag = 'input window, operand 3, single buffered']
    #allocation8 [shape = 'u8[32768]{0}', space=vmem, size = 0x8000, scoped, tag = 'input window, operand 5, single buffered']
    #allocation9 [shape = 's32[1]{0}', space=sflag, size = 0x4, scoped, tag = 'scoped memory for tpu_custom_call.1']
    #allocation10 [shape = 'u8[8192]{0}', space=vmem, size = 0x2000, scoped, tag = 'output window, operand 0, single buffered']
    %12 = vsyncpa [#allocation3], 0
    %13 = vsyncpa [#allocation6], 0
    %14 = vsyncpa [#allocation9], 0
    %15 = vsyncpa [#allocation4], 0
    // Predicated region
    $region2: #{tpu_custom_call.1} parent=1 // pred_check
      _
    $region3: #{tpu_custom_call.1} parent=1 // pred_check_branch
      %17 = sbr.rel (0) target = $region5
    $region4: #{tpu_custom_call.1} parent=1 // pred_region
      %s19 = ssub.s32 256, 256
      %20 = vsyncadd [#allocation3], %s19
      %s21 = sshll.u32 [#allocation2], 4
      %s22 = int_to_ptr.vmem [resolvable:$true] %s21
      %27 = dma.hbm_to_vmem [thread:$0]  %s0, 256, %s22, [#allocation3], 128, 128, 8
    $region5: #{tpu_custom_call.1} parent=1 // pred_fallthru
      _
    // Predicated region
    $region6: #{tpu_custom_call.1} parent=1 // pred_check
      _
    $region7: #{tpu_custom_call.1} parent=1 // pred_check_branch
      %29 = sbr.rel (0) target = $region9
    $region8: #{tpu_custom_call.1} parent=1 // pred_region
      %s31 = ssub.s32 1024, 1024
      %32 = vsyncadd [#allocation6], %s31
      %s33 = sshll.u32 [#allocation5], 4
      %s34 = int_to_ptr.vmem [resolvable:$true] %s33
      %39 = dma.hbm_to_vmem [thread:$0]  %s1, 1024, %s34, [#allocation6], 64, 64, 4
    $region9: #{tpu_custom_call.1} parent=1 // pred_fallthru
      _
    // Predicated region
    $region10: #{tpu_custom_call.1} parent=1 // pred_check
      _
    $region11: #{tpu_custom_call.1} parent=1 // pred_check_branch
      %41 = sbr.rel (0) target = $region13
    $region12: #{tpu_custom_call.1} parent=1 // pred_region
      _
    $region13: #{tpu_custom_call.1} parent=1 // pred_fallthru
      _
    // Predicated region
    $region14: #{tpu_custom_call.1} parent=1 // pred_check
      _
    $region15: #{tpu_custom_call.1} parent=1 // pred_check_branch
      %43 = sbr.rel (0) target = $region17
    $region16: #{tpu_custom_call.1} parent=1 // pred_region
      %s45 = ssub.s32 1024, 1024
      %46 = vsyncadd [#allocation6], %s45
      %s47 = sshll.u32 [#allocation7], 4
      %s48 = int_to_ptr.vmem [resolvable:$true] %s47
      %53 = dma.hbm_to_vmem [thread:$0]  %s3, 1024, %s48, [#allocation6], 64, 64, 4
    $region17: #{tpu_custom_call.1} parent=1 // pred_fallthru
      _
    // Predicated region
    $region18: #{tpu_custom_call.1} parent=1 // pred_check
      _
    $region19: #{tpu_custom_call.1} parent=1 // pred_check_branch
      %55 = sbr.rel (0) target = $region21
    $region20: #{tpu_custom_call.1} parent=1 // pred_region
      _
    $region21: #{tpu_custom_call.1} parent=1 // pred_fallthru
      _
    // Predicated region
    $region22: #{tpu_custom_call.1} parent=1 // pred_check
      _
    $region23: #{tpu_custom_call.1} parent=1 // pred_check_branch
      %57 = sbr.rel (0) target = $region25
    $region24: #{tpu_custom_call.1} parent=1 // pred_region
      %s59 = ssub.s32 1024, 1024
      %60 = vsyncadd [#allocation9], %s59
      %s61 = sshll.u32 [#allocation8], 4
      %s62 = int_to_ptr.vmem [resolvable:$true] %s61
      %67 = dma.hbm_to_vmem [thread:$0]  %s5, 1024, %s62, [#allocation9], 64, 64, 4
    $region25: #{tpu_custom_call.1} parent=1 // pred_fallthru
      _
    // Predicated region
    $region26: #{tpu_custom_call.1} parent=1 // pred_check
      _
    $region27: #{tpu_custom_call.1} parent=1 // pred_check_branch
      %69 = sbr.rel (0) target = $region29
    $region28: #{tpu_custom_call.1} parent=1 // pred_region
      _
    $region29: #{tpu_custom_call.1} parent=1 // pred_fallthru
      _
    // Predicated region
    $region30: #{tpu_custom_call.1} parent=1 // pred_check
      _
    $region31: #{tpu_custom_call.1} parent=1 // pred_check_branch
      %71 = sbr.rel (0) target = $region33
    $region32: #{tpu_custom_call.1} parent=1 // pred_region
      %72 = dma.done [#allocation3], 256
    $region33: #{tpu_custom_call.1} parent=1 // pred_fallthru
      _
    // Predicated region
    $region34: #{tpu_custom_call.1} parent=1 // pred_check
      _
    $region35: #{tpu_custom_call.1} parent=1 // pred_check_branch
      %74 = sbr.rel (0) target = $region37
    $region36: #{tpu_custom_call.1} parent=1 // pred_region
      %75 = dma.done [#allocation6], 1024
    $region37: #{tpu_custom_call.1} parent=1 // pred_fallthru
      _
    // Predicated region
    $region38: #{tpu_custom_call.1} parent=1 // pred_check
      _
    $region39: #{tpu_custom_call.1} parent=1 // pred_check_branch
      %77 = sbr.rel (0) target = $region41
    $region40: #{tpu_custom_call.1} parent=1 // pred_region
      %78 = dma.done [#allocation6], 1024
    $region41: #{tpu_custom_call.1} parent=1 // pred_fallthru
      _
    // Predicated region
    $region42: #{tpu_custom_call.1} parent=1 // pred_check
      _
    $region43: #{tpu_custom_call.1} parent=1 // pred_check_branch
      %80 = sbr.rel (0) target = $region45
    $region44: #{tpu_custom_call.1} parent=1 // pred_region
      %81 = dma.done [#allocation9], 1024
    $region45: #{tpu_custom_call.1} parent=1 // pred_fallthru
      _
    %v83 = vld [vmem:[#allocation2] sm:$0xff]
    %v84 = vld [vmem:[#allocation2 + $0x8] sm:$0xff]
    %v85 = vpack.c.bf16 %v84, %v83
    %v86 = vld [vmem:[#allocation5] sm:$0xf]
    %v87 = vld [vmem:[#allocation5 + $0x4] sm:$0xf]
    %v88 = vld [vmem:[#allocation5 + $0x8] sm:$0xf]
    %v89 = vld [vmem:[#allocation5 + $0xc] sm:$0xf]
    %v90 = vld [vmem:[#allocation5 + $0x10] sm:$0xf]
    %v91 = vld [vmem:[#allocation5 + $0x14] sm:$0xf]
    %v92 = vld [vmem:[#allocation5 + $0x18] sm:$0xf]
    %v93 = vld [vmem:[#allocation5 + $0x1c] sm:$0xf]
    %v94 = vld [vmem:[#allocation5 + $0x20] sm:$0xf]
    %v95 = vld [vmem:[#allocation5 + $0x24] sm:$0xf]
    %v96 = vld [vmem:[#allocation5 + $0x28] sm:$0xf]
    %v97 = vld [vmem:[#allocation5 + $0x2c] sm:$0xf]
    %v98 = vld [vmem:[#allocation5 + $0x30] sm:$0xf]
    %v99 = vld [vmem:[#allocation5 + $0x34] sm:$0xf]
    %v100 = vld [vmem:[#allocation5 + $0x38] sm:$0xf]
    %v101 = vld [vmem:[#allocation5 + $0x3c] sm:$0xf]
    %v102 = vld [vmem:[%s2] sm:$0x1]
    %v104 = vlaneseq
    %v105 = vshrl.u32 %v104, 7
    %v106 = vsub.s32 0, %v105
    %v107 = vrot.slane %v102, %v106
    %v125 = vunpack.c.l.b16 %v86
    %v126 = vunpack.c.l.b16 %v87
    %v127 = vunpack.c.l.b16 %v88
    %v128 = vunpack.c.l.b16 %v89
    %v129 = vunpack.c.l.b16 %v90
    %v130 = vunpack.c.l.b16 %v91
    %v131 = vunpack.c.l.b16 %v92
    %v132 = vunpack.c.l.b16 %v93
    %v133 = vunpack.c.l.b16 %v94
    %v134 = vunpack.c.l.b16 %v95
    %v135 = vunpack.c.l.b16 %v96
    %v136 = vunpack.c.l.b16 %v97
    %v137 = vunpack.c.l.b16 %v98
    %v138 = vunpack.c.l.b16 %v99
    %v139 = vunpack.c.l.b16 %v100
    %v140 = vunpack.c.l.b16 %v101
    %v141 = vpack.c.b16 %v126, %v125
    %v142 = vpack.c.b16 %v128, %v127
    %v143 = vpack.c.b16 %v130, %v129
    %v144 = vpack.c.b16 %v132, %v131
    %v145 = vpack.c.b16 %v134, %v133
    %v146 = vpack.c.b16 %v136, %v135
    %v147 = vpack.c.b16 %v138, %v137
    %v148 = vpack.c.b16 %v140, %v139
    %157 = vmatprep.subr.bf16.mxu0 0
    %158 = vmatpush1.bf16.msra.mxu0 %v141
    %159 = vmatprep.subr.bf16.mxu0 0
    %160 = vmatpush1.bf16.msra.mxu0 %v142
    %161 = vmatprep.subr.bf16.mxu0 0
    %162 = vmatpush1.bf16.msra.mxu0 %v143
    %163 = vmatprep.subr.bf16.mxu0 0
    %164 = vmatpush1.bf16.msra.mxu0 %v144
    %165 = vmatprep.subr.bf16.mxu0 0
    %166 = vmatpush1.bf16.msra.mxu0 %v145
    %167 = vmatprep.subr.bf16.mxu0 0
    %168 = vmatpush1.bf16.msra.mxu0 %v146
    %169 = vmatprep.subr.bf16.mxu0 0
    %170 = vmatpush1.bf16.msra.mxu0 %v147
    %171 = vmatprep.subr.bf16.mxu0 0
    %172 = vmatpush1.bf16.msra.mxu0 %v148
    %173 = vmatprep.subr.bf16.mxu0 0
    %174 = vmatpush1.bf16.msra.mxu0 0
    %175 = vmatprep.subr.bf16.mxu0 0
    %176 = vmatpush1.bf16.msra.mxu0 0
    %177 = vmatprep.subr.bf16.mxu0 0
    %178 = vmatpush1.bf16.msra.mxu0 0
    %179 = vmatprep.subr.bf16.mxu0 0
    %180 = vmatpush1.bf16.msra.mxu0 0
    %181 = vmatprep.subr.bf16.mxu0 0
    %182 = vmatpush1.bf16.msra.mxu0 0
    %183 = vmatprep.subr.bf16.mxu0 0
    %184 = vmatpush1.bf16.msra.mxu0 0
    %185 = vmatprep.subr.bf16.mxu0 0
    %186 = vmatpush1.bf16.msra.mxu0 0
    %187 = vmatprep.subr.bf16.mxu0 0
    %188 = vmatpush1.bf16.msra.mxu0 0
    %189 = vmatprep.mubr.bf16.mxu0 0
    %190 = vmatmul.mubr.bf16.gmra.mrb[0].mxu0 %v85
    %v191 = vpop.f32.mrb[0].mxu0
    %v192 = vadd.f32 %v107, %v191
    %v193 = vpop.f32.mrb[0].mxu0
    %v194 = vpop.f32.mrb[0].mxu0
    %v195 = vadd.f32 %v107, %v194
    %v196 = vpop.f32.mrb[0].mxu0
    %197 = vdwg.mxu0
    %vm198 = vcmp.gt.f32.partialorder %v192, 0.0
    %vm199 = vcmp.gt.f32.partialorder %v195, 0.0
    %v200 = vmul.f32 %v192, 0.01
    %v201 = vmul.f32 %v195, 0.01
    %v202 = vsel %vm198, %v192, %v200
    %v203 = vsel %vm199, %v195, %v201
    %v204 = vpack.c.bf16 %v203, %v202
    %v205 = vld [vmem:[#allocation7] sm:$0xf]
    %v206 = vld [vmem:[#allocation7 + $0x4] sm:$0xf]
    %v207 = vld [vmem:[#allocation7 + $0x8] sm:$0xf]
    %v208 = vld [vmem:[#allocation7 + $0xc] sm:$0xf]
    %v209 = vld [vmem:[#allocation7 + $0x10] sm:$0xf]
    %v210 = vld [vmem:[#allocation7 + $0x14] sm:$0xf]
    %v211 = vld [vmem:[#allocation7 + $0x18] sm:$0xf]
    %v212 = vld [vmem:[#allocation7 + $0x1c] sm:$0xf]
    %v213 = vld [vmem:[#allocation7 + $0x20] sm:$0xf]
    %v214 = vld [vmem:[#allocation7 + $0x24] sm:$0xf]
    %v215 = vld [vmem:[#allocation7 + $0x28] sm:$0xf]
    %v216 = vld [vmem:[#allocation7 + $0x2c] sm:$0xf]
    %v217 = vld [vmem:[#allocation7 + $0x30] sm:$0xf]
    %v218 = vld [vmem:[#allocation7 + $0x34] sm:$0xf]
    %v219 = vld [vmem:[#allocation7 + $0x38] sm:$0xf]
    %v220 = vld [vmem:[#allocation7 + $0x3c] sm:$0xf]
    %v221 = vld [vmem:[%s4] sm:$0x1]
    %v223 = vlaneseq
    %v224 = vshrl.u32 %v223, 7
    %v225 = vsub.s32 0, %v224
    %v226 = vrot.slane %v221, %v225
    %v244 = vunpack.c.l.b16 %v205
    %v245 = vunpack.c.l.b16 %v206
    %v246 = vunpack.c.l.b16 %v207
    %v247 = vunpack.c.l.b16 %v208
    %v248 = vunpack.c.l.b16 %v209
    %v249 = vunpack.c.l.b16 %v210
    %v250 = vunpack.c.l.b16 %v211
    %v251 = vunpack.c.l.b16 %v212
    %v252 = vunpack.c.l.b16 %v213
    %v253 = vunpack.c.l.b16 %v214
    %v254 = vunpack.c.l.b16 %v215
    %v255 = vunpack.c.l.b16 %v216
    %v256 = vunpack.c.l.b16 %v217
    %v257 = vunpack.c.l.b16 %v218
    %v258 = vunpack.c.l.b16 %v219
    %v259 = vunpack.c.l.b16 %v220
    %v260 = vpack.c.b16 %v245, %v244
    %v261 = vpack.c.b16 %v247, %v246
    %v262 = vpack.c.b16 %v249, %v248
    %v263 = vpack.c.b16 %v251, %v250
    %v264 = vpack.c.b16 %v253, %v252
    %v265 = vpack.c.b16 %v255, %v254
    %v266 = vpack.c.b16 %v257, %v256
    %v267 = vpack.c.b16 %v259, %v258
    %276 = vmatprep.subr.bf16.mxu0 0
    %277 = vmatpush1.bf16.msra.mxu0 %v260
    %278 = vmatprep.subr.bf16.mxu0 0
    %279 = vmatpush1.bf16.msra.mxu0 %v261
    %280 = vmatprep.subr.bf16.mxu0 0
    %281 = vmatpush1.bf16.msra.mxu0 %v262
    %282 = vmatprep.subr.bf16.mxu0 0
    %283 = vmatpush1.bf16.msra.mxu0 %v263
    %284 = vmatprep.subr.bf16.mxu0 0
    %285 = vmatpush1.bf16.msra.mxu0 %v264
    %286 = vmatprep.subr.bf16.mxu0 0
    %287 = vmatpush1.bf16.msra.mxu0 %v265
    %288 = vmatprep.subr.bf16.mxu0 0
    %289 = vmatpush1.bf16.msra.mxu0 %v266
    %290 = vmatprep.subr.bf16.mxu0 0
    %291 = vmatpush1.bf16.msra.mxu0 %v267
    %292 = vmatprep.subr.bf16.mxu0 0
    %293 = vmatpush1.bf16.msra.mxu0 0
    %294 = vmatprep.subr.bf16.mxu0 0
    %295 = vmatpush1.bf16.msra.mxu0 0
    %296 = vmatprep.subr.bf16.mxu0 0
    %297 = vmatpush1.bf16.msra.mxu0 0
    %298 = vmatprep.subr.bf16.mxu0 0
    %299 = vmatpush1.bf16.msra.mxu0 0
    %300 = vmatprep.subr.bf16.mxu0 0
    %301 = vmatpush1.bf16.msra.mxu0 0
    %302 = vmatprep.subr.bf16.mxu0 0
    %303 = vmatpush1.bf16.msra.mxu0 0
    %304 = vmatprep.subr.bf16.mxu0 0
    %305 = vmatpush1.bf16.msra.mxu0 0
    %306 = vmatprep.subr.bf16.mxu0 0
    %307 = vmatpush1.bf16.msra.mxu0 0
    %308 = vmatprep.mubr.bf16.mxu0 0
    %309 = vmatmul.mubr.bf16.gmra.mrb[0].mxu0 %v204
    %v310 = vpop.f32.mrb[0].mxu0
    %v311 = vadd.f32 %v226, %v310
    %v312 = vpop.f32.mrb[0].mxu0
    %v313 = vpop.f32.mrb[0].mxu0
    %v314 = vadd.f32 %v226, %v313
    %v315 = vpop.f32.mrb[0].mxu0
    %316 = vdwg.mxu0
    %vm317 = vcmp.gt.f32.partialorder %v311, 0.0
    %vm318 = vcmp.gt.f32.partialorder %v314, 0.0
    %v319 = vmul.f32 %v311, 0.01
    %v320 = vmul.f32 %v314, 0.01
    %v321 = vsel %vm317, %v311, %v319
    %v322 = vsel %vm318, %v314, %v320
    %v323 = vpack.c.bf16 %v322, %v321
    %v324 = vld [vmem:[#allocation8] sm:$0xf]
    %v325 = vld [vmem:[#allocation8 + $0x4] sm:$0xf]
    %v326 = vld [vmem:[#allocation8 + $0x8] sm:$0xf]
    %v327 = vld [vmem:[#allocation8 + $0xc] sm:$0xf]
    %v328 = vld [vmem:[#allocation8 + $0x10] sm:$0xf]
    %v329 = vld [vmem:[#allocation8 + $0x14] sm:$0xf]
    %v330 = vld [vmem:[#allocation8 + $0x18] sm:$0xf]
    %v331 = vld [vmem:[#allocation8 + $0x1c] sm:$0xf]
    %v332 = vld [vmem:[#allocation8 + $0x20] sm:$0xf]
    %v333 = vld [vmem:[#allocation8 + $0x24] sm:$0xf]
    %v334 = vld [vmem:[#allocation8 + $0x28] sm:$0xf]
    %v335 = vld [vmem:[#allocation8 + $0x2c] sm:$0xf]
    %v336 = vld [vmem:[#allocation8 + $0x30] sm:$0xf]
    %v337 = vld [vmem:[#allocation8 + $0x34] sm:$0xf]
    %v338 = vld [vmem:[#allocation8 + $0x38] sm:$0xf]
    %v339 = vld [vmem:[#allocation8 + $0x3c] sm:$0xf]
    %v340 = vld [vmem:[%s6] sm:$0x1]
    %v342 = vlaneseq
    %v343 = vshrl.u32 %v342, 7
    %v344 = vsub.s32 0, %v343
    %v345 = vrot.slane %v340, %v344
    %v363 = vunpack.c.l.b16 %v324
    %v364 = vunpack.c.l.b16 %v325
    %v365 = vunpack.c.l.b16 %v326
    %v366 = vunpack.c.l.b16 %v327
    %v367 = vunpack.c.l.b16 %v328
    %v368 = vunpack.c.l.b16 %v329
    %v369 = vunpack.c.l.b16 %v330
    %v370 = vunpack.c.l.b16 %v331
    %v371 = vunpack.c.l.b16 %v332
    %v372 = vunpack.c.l.b16 %v333
    %v373 = vunpack.c.l.b16 %v334
    %v374 = vunpack.c.l.b16 %v335
    %v375 = vunpack.c.l.b16 %v336
    %v376 = vunpack.c.l.b16 %v337
    %v377 = vunpack.c.l.b16 %v338
    %v378 = vunpack.c.l.b16 %v339
    %v379 = vpack.c.b16 %v364, %v363
    %v380 = vpack.c.b16 %v366, %v365
    %v381 = vpack.c.b16 %v368, %v367
    %v382 = vpack.c.b16 %v370, %v369
    %v383 = vpack.c.b16 %v372, %v371
    %v384 = vpack.c.b16 %v374, %v373
    %v385 = vpack.c.b16 %v376, %v375
    %v386 = vpack.c.b16 %v378, %v377
    %395 = vmatprep.subr.bf16.mxu0 0
    %396 = vmatpush1.bf16.msra.mxu0 %v379
    %397 = vmatprep.subr.bf16.mxu0 0
    %398 = vmatpush1.bf16.msra.mxu0 %v380
    %399 = vmatprep.subr.bf16.mxu0 0
    %400 = vmatpush1.bf16.msra.mxu0 %v381
    %401 = vmatprep.subr.bf16.mxu0 0
    %402 = vmatpush1.bf16.msra.mxu0 %v382
    %403 = vmatprep.subr.bf16.mxu0 0
    %404 = vmatpush1.bf16.msra.mxu0 %v383
    %405 = vmatprep.subr.bf16.mxu0 0
    %406 = vmatpush1.bf16.msra.mxu0 %v384
    %407 = vmatprep.subr.bf16.mxu0 0
    %408 = vmatpush1.bf16.msra.mxu0 %v385
    %409 = vmatprep.subr.bf16.mxu0 0
    %410 = vmatpush1.bf16.msra.mxu0 %v386
    %411 = vmatprep.subr.bf16.mxu0 0
    %412 = vmatpush1.bf16.msra.mxu0 0
    %413 = vmatprep.subr.bf16.mxu0 0
    %414 = vmatpush1.bf16.msra.mxu0 0
    %415 = vmatprep.subr.bf16.mxu0 0
    %416 = vmatpush1.bf16.msra.mxu0 0
    %417 = vmatprep.subr.bf16.mxu0 0
    %418 = vmatpush1.bf16.msra.mxu0 0
    %419 = vmatprep.subr.bf16.mxu0 0
    %420 = vmatpush1.bf16.msra.mxu0 0
    %421 = vmatprep.subr.bf16.mxu0 0
    %422 = vmatpush1.bf16.msra.mxu0 0
    %423 = vmatprep.subr.bf16.mxu0 0
    %424 = vmatpush1.bf16.msra.mxu0 0
    %425 = vmatprep.subr.bf16.mxu0 0
    %426 = vmatpush1.bf16.msra.mxu0 0
    %427 = vmatprep.mubr.bf16.mxu0 0
    %428 = vmatmul.mubr.bf16.gmra.mrb[0].mxu0 %v323
    %v429 = vpop.f32.mrb[0].mxu0
    %v430 = vadd.f32 %v345, %v429
    %v431 = vpop.f32.mrb[0].mxu0
    %v432 = vpop.f32.mrb[0].mxu0
    %v433 = vadd.f32 %v345, %v432
    %v434 = vpop.f32.mrb[0].mxu0
    %435 = vdwg.mxu0
    %436 = vst [vmem:[#allocation10] sm:$0xff] %v430
    %437 = vst [vmem:[#allocation10 + $0x8] sm:$0xff] %v433
    // Predicated region
    $region46: #{tpu_custom_call.1} parent=1 // pred_check
      _
    $region47: #{tpu_custom_call.1} parent=1 // pred_check_branch
      %439 = sbr.rel (0) target = $region49
    $region48: #{tpu_custom_call.1} parent=1 // pred_region
      %s441 = ssub.s32 256, 256
      %442 = vsyncadd [#allocation4], %s441
      %s443 = sshll.u32 [#allocation10], 4
      %s444 = int_to_ptr.vmem [resolvable:$true] %s443
      %449 = dma.vmem_to_hbm [thread:$0]  %s444, 256, %s7, [#allocation4], 128, 128, 8
    $region49: #{tpu_custom_call.1} parent=1 // pred_fallthru
      _
    // Predicated region
    $region50: #{tpu_custom_call.1} parent=1 // pred_check
      _
    $region51: #{tpu_custom_call.1} parent=1 // pred_check_branch
      %451 = sbr.rel (0) target = $region53
    $region52: #{tpu_custom_call.1} parent=1 // pred_region
      %452 = dma.done [#allocation4], 256
    $region53: #{tpu_custom_call.1} parent=1 // pred_fallthru
      _
    %453 = vsyncpa [#allocation3], 1
    %454 = vsyncpa [#allocation6], 1
    %455 = vsyncpa [#allocation9], 1
    %456 = vsyncpa [#allocation4], 1

</llo_original>
